<compile_context>
chip_gen: v5e
topology: v5e:2x2
jax: 0.10.0
libtpu: 0.0.40
codegen_flags: <defaults>
</compile_context>

<pallas_src>
import numpy as np
import jax
import jax.numpy as jnp
from jax import lax
from jax.experimental import pallas as pl
from jax.experimental.pallas import tpu as pltpu

_EPS = 1e-5
_LANES = 128


def _make_kernel(inputs, features):
    """Build the fused kernel; slab row offsets are compile-time constants."""
    I, F = int(inputs), int(features)
    K2 = 2 * F + 8                        # [h | h*h | ones-pad] contraction width
    w1_lo, w1_hi = 0, I                   # W1^T rows           (I , F)
    rh_lo, rh_hi = w1_hi, w1_hi + K2      # fused knn rhs rows  (K2, F)
    w4_lo, w4_hi = rh_hi, rh_hi + F       # padded W4^T rows    (F , 128)
    feat_f = float(F)

    dn = (((1,), (0,)), ((), ()))         # plain row-major matmul: (B,K)x(K,N)

    def kernel(x_ref, slab_ref, o_ref):
        x = x_ref[...]                                 # (B, I)   f32
        w1t = slab_ref[w1_lo:w1_hi, 0:F]               # (I, F)
        rhs = slab_ref[rh_lo:rh_hi, 0:F]               # (K2, F)
        w4t = slab_ref[w4_lo:w4_hi, :]                 # (F, 128)

        # --- fc1 (pre-transposed) + ReLU ---
        h = lax.dot_general(x, w1t, dn, preferred_element_type=jnp.float32)
        h = jnp.maximum(h, 0.0)

        # --- BatchNorm1d (training-mode batch stats, affine=False), one-pass,
        #     with the 1/sqrt(features) post-scale folded into the rsqrt ---
        mean = jnp.mean(h, axis=0, keepdims=True)
        msq = jnp.mean(h * h, axis=0, keepdims=True)
        var = jnp.maximum(msq - mean * mean, 0.0)
        h = (h - mean) * lax.rsqrt((var + _EPS) * jnp.float32(feat_f))

        # --- fused knn(h, fc2, alpha, r2) + ReLU, single MXU pass:
        #     [h | h*h | 1] @ [2*W2^T ; -alpha*1 ; alpha*(r2-||W2_j||^2) ; 0]
        #     = 2*h@W2^T - alpha*||h_i||^2 + alpha*(r2 - ||W2_j||^2) ---
        ones = jnp.ones((h.shape[0], 8), jnp.float32)
        lhs = jnp.concatenate([h, h * h, ones], axis=-1)          # (B, K2)
        z = lax.dot_general(lhs, rhs, dn, preferred_element_type=jnp.float32)
        z = jnp.maximum(z, 0.0)

        # --- fc4 into a lane-dense (B, 128) tile; only lanes 0:2 meaningful ---
        o_ref[...] = lax.dot_general(z, w4t, dn,
                                     preferred_element_type=jnp.float32)

    return kernel


def precompute_weight_slab(w1, w2, w4, alpha, r2):
    """Pack all weight-side operands into one sublane-aligned (rows, 128) f32 slab.

    Row layout (all range starts/lengths are multiples of 8):
      [0        , I        )  W1^T (I, F) in lanes 0:F
      [I        , I+2F+8   )  fused knn rhs:
                                rows 0:F     -> 2*W2^T
                                rows F:2F    -> -alpha (dense ones block)
                                row  2F      -> alpha*(r2 - ||W2_j||^2)
                                rows 2F+1:.. -> 0
      [I+2F+8   , I+3F+8   )  W4^T zero-padded to 128 lanes (lane-dense output)

    NOTE: alpha / r2 / all weights are baked in. r2 is learnable in
    Net3_learnable_r, so if a caller caches this slab across optimizer steps it
    MUST be rebuilt whenever fc1/fc2/fc4, alpha or r2 change.
    """
    w1 = jnp.asarray(w1, jnp.float32)              # (F, I)  PyTorch (out, in)
    w2 = jnp.asarray(w2, jnp.float32)              # (F, F)
    w4 = jnp.asarray(w4, jnp.float32)              # (2, F)
    alpha = jnp.asarray(alpha, jnp.float32)
    r2 = jnp.asarray(r2, jnp.float32)

    F, I = w1.shape
    assert I % 8 == 0 and F % 8 == 0, "pad inputs/features to multiples of 8"
    assert 2 * F + 8 <= _LANES, "fused ||h||^2 trick assumes 2F+8 <= 128"
    # TODO(synk): for FEATURES > 60 replace the dense -alpha ones block with a
    # single appended ||h||^2 column (one in-kernel XLU reduce) per the review.

    def pad_lanes(a):
        return jnp.pad(a, ((0, 0), (0, _LANES - a.shape[1])))

    w1t = pad_lanes(w1.T)                                             # (I, 128)

    bias_row = (alpha * (r2 - jnp.sum(w2 * w2, axis=1)))[None, :]     # (1, F)
    fused_rhs = jnp.concatenate(
        [2.0 * w2.T,
         -alpha * jnp.ones((F, F), jnp.float32),
         bias_row,
         jnp.zeros((7, F), jnp.float32)], axis=0)                     # (2F+8, F)
    fused_rhs = pad_lanes(fused_rhs)                                  # (2F+8, 128)

    w4t = jnp.zeros((F, _LANES), jnp.float32).at[:, :w4.shape[0]].set(w4.T)

    return jnp.concatenate([w1t, fused_rhs, w4t], axis=0)             # (I+3F+8, 128)


def net3_forward(x, w1, w2, w4, alpha, r2, slab=None):
    if slab is None:
        slab = precompute_weight_slab(w1, w2, w4, alpha, r2)
    x = jnp.asarray(x, jnp.float32)
    B = x.shape[0]
    F, I = jnp.asarray(w1).shape
    n_out = jnp.asarray(w4).shape[0]

    vmem = pl.BlockSpec(memory_space=pltpu.MemorySpace.VMEM)
    out_padded = pl.pallas_call(
        _make_kernel(I, F),
        out_shape=jax.ShapeDtypeStruct((B, _LANES), jnp.float32),
        in_specs=[vmem, vmem],         # x + packed weight slab: 2 DMAs total
        out_specs=vmem,
    )(x, slab)
    return out_padded[:, :n_out]


def _reference(x, w1, w2, w4, alpha, r2):
    h = jnp.maximum(x @ w1.T, 0.0)
    mean = jnp.mean(h, axis=0, keepdims=True)
    var = jnp.mean((h - mean) ** 2, axis=0, keepdims=True)
    h = (h - mean) / jnp.sqrt(var + _EPS)
    h = h / np.sqrt(h.shape[1])
    xx = jnp.sum(h * h, axis=1, keepdims=True)
    mm = jnp.sum(w2 * w2, axis=1, keepdims=True).T
    z = jnp.maximum(alpha * (r2 - mm - xx) + 2.0 * (h @ w2.T), 0.0)
    return z @ w4.T


if __name__ == "__main__":
    B, INPUTS, FEATURES = 8, 16, 32
    key = jax.random.PRNGKey(0)
    kx, k1, k2, k4 = jax.random.split(key, 4)

    # Deterministic PyTorch-style Linear init: U(-1/sqrt(fan_in), 1/sqrt(fan_in))
    def _linear_init(k, out_f, in_f):
        bound = 1.0 / np.sqrt(in_f)
        return jax.random.uniform(k, (out_f, in_f), jnp.float32, -bound, bound)

    x = jax.random.normal(kx, (B, INPUTS), jnp.float32)
    w1 = _linear_init(k1, FEATURES, INPUTS)
    w2 = _linear_init(k2, FEATURES, FEATURES)
    w4 = _linear_init(k4, 2, FEATURES)
    alpha, r2 = 0.5, 1.0

    # Weight-side slab: build once per weight/alpha/r2 update, reuse across forwards.
    slab = precompute_weight_slab(w1, w2, w4, alpha, r2)

    out = net3_forward(x, w1, w2, w4, alpha, r2, slab=slab)
    out = jax.block_until_ready(out)

    ref = _reference(x, w1, w2, w4, alpha, r2)
    assert out.shape == (B, 2)
    np.testing.assert_allclose(np.asarray(out), np.asarray(ref), rtol=1e-4, atol=1e-5)
    print("KERNEL_OK")
</pallas_src>

<mosaic_0001>
module attributes {stable_mosaic.version = 11 : i64} {
  func.func @kernel(%arg0: memref<8x16xf32, #tpu.memory_space<vmem>>, %arg1: memref<120x128xf32, #tpu.memory_space<vmem>>, %arg2: memref<8x128xf32, #tpu.memory_space<vmem>>) attributes {dimension_semantics = [], scalar_prefetch = 0 : i64, scratch_operands = 0 : i64, tpu.core_type = #tpu.core_type<tc>} {
    %c0 = arith.constant 0 : index
    %c0_0 = arith.constant 0 : index
    %0 = vector.load %arg0[%c0, %c0_0] : memref<8x16xf32, #tpu.memory_space<vmem>>, vector<8x16xf32>
    %c0_1 = arith.constant 0 : index
    %c0_2 = arith.constant 0 : index
    %1 = vector.load %arg1[%c0_1, %c0_2] : memref<120x128xf32, #tpu.memory_space<vmem>>, vector<16x32xf32>
    %c16 = arith.constant 16 : index
    %c0_3 = arith.constant 0 : index
    %2 = vector.load %arg1[%c16, %c0_3] : memref<120x128xf32, #tpu.memory_space<vmem>>, vector<72x32xf32>
    %c88 = arith.constant 88 : index
    %c0_4 = arith.constant 0 : index
    %3 = vector.load %arg1[%c88, %c0_4] : memref<120x128xf32, #tpu.memory_space<vmem>>, vector<32x128xf32>
    %cst = arith.constant dense<0.000000e+00> : vector<8x32xf32>
    %4 = tpu.matmul %0, %1, %cst {dimension_numbers = #tpu.dot_dimension_numbers<[1], [0], [0], [1], [0, 0, 1, 1], [], []>} : vector<8x16xf32>, vector<16x32xf32>, vector<8x32xf32> -> vector<8x32xf32>
    %cst_5 = arith.constant 0.000000e+00 : f32
    %5 = vector.broadcast %cst_5 : f32 to vector<8x32xf32>
    %6 = arith.maximumf %4, %5 : vector<8x32xf32>
    %cst_6 = arith.constant dense<0.000000e+00> : vector<32xf32>
    %7 = vector.multi_reduction <add>, %6, %cst_6 [0] : vector<8x32xf32> to vector<32xf32>
    %8 = vector.shape_cast %7 : vector<32xf32> to vector<1x32xf32>
    %cst_7 = arith.constant 8.000000e+00 : f32
    %9 = vector.broadcast %cst_7 : f32 to vector<1x32xf32>
    %10 = arith.divf %8, %9 : vector<1x32xf32>
    %11 = arith.mulf %6, %6 : vector<8x32xf32>
    %cst_8 = arith.constant dense<0.000000e+00> : vector<32xf32>
    %12 = vector.multi_reduction <add>, %11, %cst_8 [0] : vector<8x32xf32> to vector<32xf32>
    %13 = vector.shape_cast %12 : vector<32xf32> to vector<1x32xf32>
    %cst_9 = arith.constant 8.000000e+00 : f32
    %14 = vector.broadcast %cst_9 : f32 to vector<1x32xf32>
    %15 = arith.divf %13, %14 : vector<1x32xf32>
    %16 = arith.mulf %10, %10 : vector<1x32xf32>
    %17 = arith.subf %15, %16 : vector<1x32xf32>
    %cst_10 = arith.constant 0.000000e+00 : f32
    %18 = vector.broadcast %cst_10 : f32 to vector<1x32xf32>
    %19 = arith.maximumf %17, %18 : vector<1x32xf32>
    %20 = vector.broadcast %10 : vector<1x32xf32> to vector<8x32xf32>
    %21 = arith.subf %6, %20 : vector<8x32xf32>
    %cst_11 = arith.constant 9.99999974E-6 : f32
    %22 = vector.broadcast %cst_11 : f32 to vector<1x32xf32>
    %23 = arith.addf %19, %22 : vector<1x32xf32>
    %cst_12 = arith.constant 3.200000e+01 : f32
    %24 = vector.broadcast %cst_12 : f32 to vector<1x32xf32>
    %25 = arith.mulf %23, %24 : vector<1x32xf32>
    %26 = math.rsqrt %25 : vector<1x32xf32>
    %27 = vector.broadcast %26 : vector<1x32xf32> to vector<8x32xf32>
    %28 = arith.mulf %21, %27 : vector<8x32xf32>
    %cst_13 = arith.constant 1.000000e+00 : f32
    %29 = vector.broadcast %cst_13 : f32 to vector<8x8xf32>
    %30 = arith.mulf %28, %28 : vector<8x32xf32>
    %31 = tpu.concatenate %28, %30, %29 in 1 : vector<8x32xf32>, vector<8x32xf32>, vector<8x8xf32> -> vector<8x72xf32>
    %cst_14 = arith.constant dense<0.000000e+00> : vector<8x32xf32>
    %32 = tpu.matmul %31, %2, %cst_14 {dimension_numbers = #tpu.dot_dimension_numbers<[1], [0], [0], [1], [0, 0, 1, 1], [], []>} : vector<8x72xf32>, vector<72x32xf32>, vector<8x32xf32> -> vector<8x32xf32>
    %cst_15 = arith.constant 0.000000e+00 : f32
    %33 = vector.broadcast %cst_15 : f32 to vector<8x32xf32>
    %34 = arith.maximumf %32, %33 : vector<8x32xf32>
    %cst_16 = arith.constant dense<0.000000e+00> : vector<8x128xf32>
    %35 = tpu.matmul %34, %3, %cst_16 {dimension_numbers = #tpu.dot_dimension_numbers<[1], [0], [0], [1], [0, 0, 1, 1], [], []>} : vector<8x32xf32>, vector<32x128xf32>, vector<8x128xf32> -> vector<8x128xf32>
    %c0_17 = arith.constant 0 : index
    %c0_18 = arith.constant 0 : index
    %36 = vector.load %arg2[%c0_17, %c0_18] : memref<8x128xf32, #tpu.memory_space<vmem>>, vector<8x128xf32>
    tpu.vector_store %arg2[%c0_17, %c0_18], %35 {strides = array<i32>} : memref<8x128xf32, #tpu.memory_space<vmem>>, vector<8x128xf32>,
    return
  }
}

</mosaic_0001>

<llo_original>
// kernel: tpu_custom_call.1
$region0: #{tpu_custom_call.1}
  #allocation0 [shape = 'u32[]', space=smem, size = 0x4, offset = 0x4, fixed_abs, tag = 'smem constant byte address 0x4 - core index']
  #allocation1 [shape = 'u32[72,128]{1,0:T(1,128)}', space=vmem, size = 0x9000, scoped, tag = 'internal scratch']
  %s0 = inlined_call_operand.hbm [shape: f32[8,16], index: 0, kind: input, shape index: {}]
  %s1 = inlined_call_operand.hbm [shape: f32[120,128], index: 1, kind: input, shape index: {}]
  %s2 = inlined_call_operand.hbm [shape: f32[8,128], index: 2, kind: output, shape index: {}]
  %s3 = sld [smem:[#allocation0]]
  $region26: #{tpu_custom_call.1} parent=0
    _
  %s5 = ssub.s32 1, %s3
  %s6 = scalar_select 0, %s5, %s3
  $region1: #{tpu_custom_call.1} parent=0
    #allocation2 [shape = 'u8[4096]{0}', space=vmem, size = 0x1000, scoped, tag = 'input window, operand 0, single buffered']
    #allocation3 [shape = 's32[1]{0}', space=sflag, size = 0x4, scoped, tag = 'scoped memory for tpu_custom_call.1']
    #allocation4 [shape = 's32[1]{0}', space=sflag, size = 0x4, scoped, tag = 'scoped memory for tpu_custom_call.1']
    #allocation5 [shape = 'u8[61440]{0}', space=vmem, size = 0xf000, scoped, tag = 'input window, operand 1, single buffered']
    #allocation6 [shape = 's32[1]{0}', space=sflag, size = 0x4, scoped, tag = 'scoped memory for tpu_custom_call.1']
    #allocation7 [shape = 'u8[4096]{0}', space=vmem, size = 0x1000, scoped, tag = 'output window, operand 0, single buffered']
    %7 = vsyncpa [#allocation3], 0
    %8 = vsyncpa [#allocation6], 0
    %9 = vsyncpa [#allocation4], 0
    // Predicated region
    $region2: #{tpu_custom_call.1} parent=1 // pred_check
      _
    $region3: #{tpu_custom_call.1} parent=1 // pred_check_branch
      %11 = sbr.rel (0) target = $region5
    $region4: #{tpu_custom_call.1} parent=1 // pred_region
      %13 = vsyncadd [#allocation3], 0
      %s15 = sshll.u32 %s0, 4
      %s16 = int_to_ptr.hbm [resolvable:$true] %s15
      %s17 = sshll.u32 [#allocation2], 4
      %s18 = int_to_ptr.vmem [resolvable:$true] %s17
      %20 = dma.hbm_to_vmem [thread:$0]  %s16, 128, %s18, [#allocation3]
    $region5: #{tpu_custom_call.1} parent=1 // pred_fallthru
      _
    // Predicated region
    $region6: #{tpu_custom_call.1} parent=1 // pred_check
      _
    $region7: #{tpu_custom_call.1} parent=1 // pred_check_branch
      %22 = sbr.rel (0) target = $region9
    $region8: #{tpu_custom_call.1} parent=1 // pred_region
      %24 = vsyncadd [#allocation6], 0
      %s25 = sshll.u32 %s1, 4
      %s26 = int_to_ptr.hbm [resolvable:$true] %s25
      %s27 = sshll.u32 [#allocation5], 4
      %s28 = int_to_ptr.vmem [resolvable:$true] %s27
      %33 = dma.hbm_to_vmem [thread:$0]  %s26, 1920, %s28, [#allocation6], 128, 128, 8
    $region9: #{tpu_custom_call.1} parent=1 // pred_fallthru
      _
    // Predicated region
    $region10: #{tpu_custom_call.1} parent=1 // pred_check
      _
    $region11: #{tpu_custom_call.1} parent=1 // pred_check_branch
      %35 = sbr.rel (0) target = $region13
    $region12: #{tpu_custom_call.1} parent=1 // pred_region
      %37 = dma.done [#allocation3], 128
    $region13: #{tpu_custom_call.1} parent=1 // pred_fallthru
      _
    // Predicated region
    $region14: #{tpu_custom_call.1} parent=1 // pred_check
      _
    $region15: #{tpu_custom_call.1} parent=1 // pred_check_branch
      %39 = sbr.rel (0) target = $region17
    $region16: #{tpu_custom_call.1} parent=1 // pred_region
      %41 = dma.done [#allocation6], 1920
    $region17: #{tpu_custom_call.1} parent=1 // pred_fallthru
      _
    %v42 = vld [vmem:[#allocation2] sm:$0xff]
    %v43 = vld [vmem:[#allocation5] sm:$0xff]
    %v44 = vld [vmem:[#allocation5 + $0x8] sm:$0xff]
    %v45 = vld [vmem:[#allocation5 + $0x10] sm:$0xff]
    %v46 = vld [vmem:[#allocation5 + $0x18] sm:$0xff]
    %v47 = vld [vmem:[#allocation5 + $0x20] sm:$0xff]
    %v48 = vld [vmem:[#allocation5 + $0x28] sm:$0xff]
    %v49 = vld [vmem:[#allocation5 + $0x30] sm:$0xff]
    %v50 = vld [vmem:[#allocation5 + $0x38] sm:$0xff]
    %v51 = vld [vmem:[#allocation5 + $0x40] sm:$0xff]
    %v52 = vld [vmem:[#allocation5 + $0x48] sm:$0xff]
    %v53 = vld [vmem:[#allocation5 + $0x50] sm:$0xff]
    %v54 = vld [vmem:[#allocation5 + $0x58] sm:$0xff]
    %v55 = vld [vmem:[#allocation5 + $0x60] sm:$0xff]
    %v56 = vld [vmem:[#allocation5 + $0x68] sm:$0xff]
    %v57 = vld [vmem:[#allocation5 + $0x70] sm:$0xff]
    %vm58 = vcmask 130048
    %v60 = vsel %vm58, %v42, 0
    %62 = vmatpush.msra.mxu0 0.0
    %63 = vmatpush.msra.mxu0 0.0
    %64 = vmatpush.msra.mxu0 0.0
    %65 = vmatpush.msra.mxu0 0.0
    %66 = vmatpush.msra.mxu0 0.0
    %67 = vmatpush.msra.mxu0 0.0
    %68 = vmatpush.msra.mxu0 0.0
    %69 = vmatpush.msra.mxu0 0.0
    %70 = vmatpush.msra.mxu0 0.0
    %71 = vmatpush.msra.mxu0 0.0
    %72 = vmatpush.msra.mxu0 0.0
    %73 = vmatpush.msra.mxu0 0.0
    %74 = vmatpush.msra.mxu0 0.0
    %75 = vmatpush.msra.mxu0 0.0
    %76 = vmatpush.msra.mxu0 %v44
    %77 = vmatpush.msra.mxu0 %v43
    %78 = vmatmul.f32.gmra.mxu0 %v60
    %v79 = vpop.f32.mrf.mxu0
    %v80 = vadd.f32 0.0, %v79
    %81 = vdwg.mxu0
    %v82 = vmax.f32 %v80, 0.0
    %vm83 = vcmask 261120
    %v84 = vsel %vm83, %v82, 0.0
    %v85 = vrot.slane %v84, 4
    %v86 = vadd.f32 %v84, %v85
    %v87 = vrot.slane %v86, 2
    %v88 = vadd.f32 %v86, %v87
    %v89 = vrot.slane %v88, 1
    %v90 = vadd.f32 %v88, %v89
    %v91 = vrcp.pop 8.0
    %v92 = vmul.f32 8.0, %v91
    %v93 = vsub.f32 1.0, %v92
    %v94 = vmul.f32 %v91, %v93
    %v95 = vadd.f32 %v91, %v94
    %vm96 = vweird.f32 %v91
    %v97 = vsel %vm96, %v91, %v95
    %v98 = vmul.f32 %v90, %v97
    %v99 = vmul.f32 %v82, %v82
    %v100 = vsel %vm83, %v99, 0.0
    %v101 = vrot.slane %v100, 4
    %v102 = vadd.f32 %v100, %v101
    %v103 = vrot.slane %v102, 2
    %v104 = vadd.f32 %v102, %v103
    %v105 = vrot.slane %v104, 1
    %v106 = vadd.f32 %v104, %v105
    %v107 = vmul.f32 %v106, %v97
    %v108 = vmul.f32 %v98, %v98
    %v109 = vsub.f32 %v107, %v108
    %v110 = vmax.f32 %v109, 0.0
    %v111 = vsub.f32 %v82, %v98
    %v112 = vadd.f32 %v110, 1e-05
    %v113 = vmul.f32 %v112, 32.0
    %v114 = vrsqrt.pop %v113
    %v115 = vmul.f32 %v114, %v113
    %v116 = vmul.f32 %v115, %v114
    %v117 = vmul.f32 0.5, %v116
    %v118 = vsub.f32 1.5, %v117
    %v119 = vmul.f32 %v114, %v118
    %vm120 = vweird.f32 %v113
    %vm121 = vweird.f32 %v114
    %vm122 = vmor %vm120, %vm121
    %v123 = vsel %vm122, %v114, %v119
    %v124 = vmul.f32 %v111, %v123
    %v125 = vmul.f32 %v124, %v124
    %127 = vrot.lane.b32.xlu0 %v125, 32
    %v128 = vpop.permute.xlu0 %127
    %v130 = vsel %vm83, %v124, %v128
    %vm131 = vcmask 523264
    %v132 = vsel %vm131, %v130, 1.0
    %vm133 = vcmask 588800
    %v135 = vsel %vm133, %v132, 0
    %137 = vmatpush.msra.mxu0 0.0
    %138 = vmatpush.msra.mxu0 0.0
    %139 = vmatpush.msra.mxu0 0.0
    %140 = vmatpush.msra.mxu0 0.0
    %141 = vmatpush.msra.mxu0 0.0
    %142 = vmatpush.msra.mxu0 0.0
    %143 = vmatpush.msra.mxu0 0.0
    %144 = vmatpush.msra.mxu0 %v53
    %145 = vmatpush.msra.mxu0 %v52
    %146 = vmatpush.msra.mxu0 %v51
    %147 = vmatpush.msra.mxu0 %v50
    %148 = vmatpush.msra.mxu0 %v49
    %149 = vmatpush.msra.mxu0 %v48
    %150 = vmatpush.msra.mxu0 %v47
    %151 = vmatpush.msra.mxu0 %v46
    %152 = vmatpush.msra.mxu0 %v45
    %153 = vmatmul.f32.gmra.mxu0 %v135
    %v154 = vpop.f32.mrf.mxu0
    %v155 = vadd.f32 0.0, %v154
    %156 = vdwg.mxu0
    %v157 = vmax.f32 %v155, 0.0
    %v159 = vsel %vm83, %v157, 0
    %161 = vmatpush.msra.mxu0 0.0
    %162 = vmatpush.msra.mxu0 0.0
    %163 = vmatpush.msra.mxu0 0.0
    %164 = vmatpush.msra.mxu0 0.0
    %165 = vmatpush.msra.mxu0 0.0
    %166 = vmatpush.msra.mxu0 0.0
    %167 = vmatpush.msra.mxu0 0.0
    %168 = vmatpush.msra.mxu0 0.0
    %169 = vmatpush.msra.mxu0 0.0
    %170 = vmatpush.msra.mxu0 0.0
    %171 = vmatpush.msra.mxu0 0.0
    %172 = vmatpush.msra.mxu0 0.0
    %173 = vmatpush.msra.mxu0 %v57
    %174 = vmatpush.msra.mxu0 %v56
    %175 = vmatpush.msra.mxu0 %v55
    %176 = vmatpush.msra.mxu0 %v54
    %177 = vmatmul.f32.gmra.mxu0 %v159
    %v178 = vpop.f32.mrf.mxu0
    %v179 = vadd.f32 0.0, %v178
    %180 = vdwg.mxu0
    %181 = vst [vmem:[#allocation7] sm:$0xff] %v179
    // Predicated region
    $region18: #{tpu_custom_call.1} parent=1 // pred_check
      _
    $region19: #{tpu_custom_call.1} parent=1 // pred_check_branch
      %183 = sbr.rel (0) target = $region21
    $region20: #{tpu_custom_call.1} parent=1 // pred_region
      %185 = vsyncadd [#allocation4], 0
      %s187 = sshll.u32 [#allocation7], 4
      %s188 = int_to_ptr.vmem [resolvable:$true] %s187
      %s189 = sshll.u32 %s2, 4
      %s190 = int_to_ptr.hbm [resolvable:$true] %s189
      %192 = dma.vmem_to_hbm [thread:$0]  %s188, 128, %s190, [#allocation4]
    $region21: #{tpu_custom_call.1} parent=1 // pred_fallthru
      _
    // Predicated region
    $region22: #{tpu_custom_call.1} parent=1 // pred_check
      _
    $region23: #{tpu_custom_call.1} parent=1 // pred_check_branch
      %194 = sbr.rel (0) target = $region25
    $region24: #{tpu_custom_call.1} parent=1 // pred_region
      %196 = dma.done [#allocation4], 128
    $region25: #{tpu_custom_call.1} parent=1 // pred_fallthru
      _
    %197 = vsyncpa [#allocation3], 1
    %198 = vsyncpa [#allocation6], 1
    %199 = vsyncpa [#allocation4], 1

</llo_original>
